<compile_context>
chip_gen: v7x
topology: tpu7x:2x2x1
jax: 0.10.0
libtpu: 0.0.40
codegen_flags: <defaults>
</compile_context>

<pallas_src>
import functools
import math
import numpy as np
import jax
import jax.numpy as jnp
from jax import lax
from jax.experimental import pallas as pl
from jax.experimental.pallas import tpu as pltpu

_INV_SQRT2 = 0.7071067811865476


def attflat_kernel(x_ref, w1_ref, b1_ref, w2t_ref, wm_ref, bm_ref, o_ref, *,
                   approx_gelu, approx_recip):
    Bt, S, H = x_ref.shape
    G, mid = w2t_ref.shape

    x = x_ref[...]                                   # (Bt, S, H), f32
    x2 = x.reshape(Bt * S, H)                        # batch*seq fills the MXU M dim

    # --- mlp.fc: Linear(H -> mid) + GELU; MXU in the weight dtype, f32 accumulate ---
    h = jnp.dot(x2.astype(w1_ref.dtype), w1_ref[...],
                preferred_element_type=jnp.float32) + b1_ref[...]
    if approx_gelu:
        # tanh-form GELU rides the EUP slot (~1e-3 deviation from exact erf).
        h = jax.nn.gelu(h, approximate=True)
    else:
        # nn.GELU() default: exact erf, f32 VPU math.
        h = 0.5 * h * (1.0 + lax.erf(h * _INV_SQRT2))
    h3 = h.reshape(Bt, S, mid)

    # Per-glimpse path (G is small; MCAN uses G=1): the mid->G projection and the
    # attention-weighted sum are VPU broadcast-mul + reduce instead of M=1 / N=1
    # MXU matmuls, and the softmax runs on a dense (Bt, S) layout (S on lanes).
    # TODO(synk): for large G (>~16) an MXU formulation of these steps would win.
    acc = None
    for g in range(G):                               # static, tiny loop
        w2_g = w2t_ref[g:g + 1, :].reshape(1, 1, mid)          # (1,1,mid) f32
        # mlp.linear bias b2[g] is constant along the softmax axis (dim=1) and
        # cancels inside the softmax, so it is intentionally omitted.
        logits = jnp.sum(h3 * w2_g, axis=-1)                   # (Bt, S) f32

        # softmax over the sequence axis (PyTorch dim=1); lane-axis reductions
        logits = logits - jnp.max(logits, axis=-1, keepdims=True)
        p = jnp.exp(logits)
        denom = jnp.sum(p, axis=-1, keepdims=True)
        if approx_recip:
            p = p * pl.reciprocal(denom, approx=True)
        else:
            p = p / denom

        # attention-weighted sum over S: f32 VPU multiply + sublane reduce
        xatt = jnp.sum(p[:, :, None] * x, axis=1)              # (Bt, H) f32

        # linear_merge contribution of glimpse g (glimpse-major rows of Wm),
        # accumulated in f32 -- identical to concat-then-matmul, without the
        # (Bt, G, H) -> (Bt, G*H) relayout.
        part = jnp.dot(xatt.astype(wm_ref.dtype), wm_ref[g * H:(g + 1) * H, :],
                       preferred_element_type=jnp.float32)
        acc = part if acc is None else acc + part

    o_ref[...] = (acc + bm_ref[...]).astype(o_ref.dtype)


def _vmem_capacity_bytes():
    """Physical VMEM per TensorCore (64 MiB v7x, 128 MiB v5e/v6e); safe fallback."""
    try:
        cap = int(getattr(pltpu.get_tpu_info(), "vmem_capacity_bytes", 0))
        if cap > 0:
            return cap
    except Exception:
        pass
    return 64 * 1024 * 1024


def _round_down(v, m):
    return (v // m) * m


def _per_row_vmem_bytes(S, H, mid, G, Fout):
    # Generous per-batch-row working set: double-buffered f32 x tile + bf16 copy +
    # the (S, H) product temporary, h (f32) + GELU temporaries + h3, per-glimpse
    # xatt / accumulator, double-buffered output tile.
    return 16 * S * H + 12 * S * mid + 8 * G * H + 16 * Fout


def _weight_vmem_bytes(H, mid, G, Fout, mm_bytes):
    # Worst case (double-buffered) even though the index maps are constant.
    return 2 * (H * mid * mm_bytes + G * H * Fout * mm_bytes
                + G * mid * 4 + mid * 4 + Fout * 4)


def _pick_block_b(B, S, H, mid, G, Fout, capacity, mm_bytes):
    """Largest batch block that fits the per-generation VMEM budget (cap 256,
    prefer multiples of 128), then shrink so grid >= 2 when the whole batch
    would otherwise fit in one step (keeps both v7x TensorCores busy)."""
    budget = int(capacity * 0.70) - _weight_vmem_bytes(H, mid, G, Fout, mm_bytes) - (4 << 20)
    per_row = max(_per_row_vmem_bytes(S, H, mid, G, Fout), 1)
    bt = max(8, budget // per_row)
    bt = min(bt, 256)                      # MXU M dim saturates at 256 rows/pass
    m128 = _round_down(bt, 128)
    if m128 >= 128 and 4 * m128 >= 3 * bt:  # snap to 128 unless it wastes >25% budget
        bt = m128
    else:
        bt = max(8, _round_down(bt, 8))
    if B >= 16 and bt >= B:
        bt = max(8, -(-((B + 1) // 2) // 8) * 8)   # split batch -> grid of >= 2
    return max(1, min(bt, B))


def _vmem_limit_bytes(bt, S, H, mid, G, Fout, capacity, mm_bytes):
    est = (_weight_vmem_bytes(H, mid, G, Fout, mm_bytes)
           + bt * _per_row_vmem_bytes(S, H, mid, G, Fout) + (8 << 20))
    hi = int(capacity * 0.85)
    lo = min(32 << 20, hi)
    return int(min(max(est, lo), hi))


def attflat(x, params, *, block_b=None, mm_dtype=jnp.bfloat16,
            approx_gelu=False, approx_softmax_recip=True):
    w1, b1, w2, b2, wm, bm = params
    _ = b2   # constant along the softmax axis (dim=1); cancels -- see kernel comment
    B, S, H = x.shape
    mid = w1.shape[1]
    G = w2.shape[1]
    Fout = wm.shape[1]
    mm_bytes = np.dtype(mm_dtype).itemsize

    capacity = _vmem_capacity_bytes()
    if block_b is None:
        block_b = _pick_block_b(B, S, H, mid, G, Fout, capacity, mm_bytes)
    block_b = max(1, min(block_b, B))
    grid_b = pl.cdiv(B, block_b)
    vmem_limit = _vmem_limit_bytes(block_b, S, H, mid, G, Fout, capacity, mm_bytes)

    # x stays f32 into the kernel (one 4 B/elem HBM read; the matmul cast happens
    # on the VPU in VMEM).  Weights are cast once here; jitted callers should
    # hoist / pre-cast so this happens outside the hot path.
    x_in = jnp.asarray(x, jnp.float32)
    w1_in = w1.astype(mm_dtype)
    wm_in = wm.astype(mm_dtype)
    w2t_in = jnp.asarray(w2, jnp.float32).T            # (G, mid): per-glimpse rows
    b1_in = b1.reshape(1, mid).astype(jnp.float32)
    bm_in = bm.reshape(1, Fout).astype(jnp.float32)

    kernel = functools.partial(attflat_kernel, approx_gelu=approx_gelu,
                               approx_recip=approx_softmax_recip)

    def run(single_buffer_weights):
        def inv_spec(shape):
            # Grid-invariant operand (constant index map): single-buffering
            # reclaims the second copy's VMEM (matters inside v7x's 64 MiB).
            if single_buffer_weights:
                return pl.BlockSpec(shape, lambda b: (0,) * len(shape),
                                    pipeline_mode=pl.Buffered(1))
            return pl.BlockSpec(shape, lambda b: (0,) * len(shape))

        return pl.pallas_call(
            kernel,
            out_shape=jax.ShapeDtypeStruct((B, Fout), jnp.float32),
            grid_spec=pltpu.PrefetchScalarGridSpec(
                num_scalar_prefetch=0,
                grid=(grid_b,),
                in_specs=[
                    pl.BlockSpec((block_b, S, H), lambda b: (b, 0, 0)),   # x (f32)
                    inv_spec((H, mid)),                                   # W1
                    inv_spec((1, mid)),                                   # b1
                    inv_spec((G, mid)),                                   # W2^T
                    inv_spec((G * H, Fout)),                              # W_merge
                    inv_spec((1, Fout)),                                  # b_merge
                ],
                out_specs=pl.BlockSpec((block_b, Fout), lambda b: (b, 0)),
            ),
            compiler_params=pltpu.CompilerParams(
                dimension_semantics=("parallel",),   # independent batch blocks
                vmem_limit_bytes=vmem_limit,
            ),
        )(x_in, w1_in, b1_in, w2t_in, wm_in, bm_in)

    try:
        return run(True)
    except Exception:
        # pl.Buffered(1) not supported on this jax/Mosaic build: default buffering.
        return run(False)


def attflat_ref(x, params):
    """Pure-JAX f32 reference of the PyTorch forward (eval mode)."""
    w1, b1, w2, b2, wm, bm = params
    h = jax.nn.gelu(x @ w1 + b1, approximate=False)
    att = jax.nn.softmax(h @ w2 + b2, axis=1)          # (B, S, G)
    B, S, H = x.shape
    G = w2.shape[1]
    xatt = jnp.einsum("bsg,bsh->bgh", att, x).reshape(B, G * H)
    return xatt @ wm + bm


def _init_linear(key, in_size, out_size):
    # PyTorch nn.Linear default: U(-1/sqrt(in), 1/sqrt(in)) for weight and bias.
    kw, kb = jax.random.split(key)
    bound = 1.0 / math.sqrt(in_size)
    w = jax.random.uniform(kw, (in_size, out_size), jnp.float32, -bound, bound)
    b = jax.random.uniform(kb, (out_size,), jnp.float32, -bound, bound)
    return w, b


if __name__ == "__main__":
    # Small shapes: hidden_size=32, flat_mlp_size=64, flat_glimpses=1, flat_out_size=128
    B, S, H = 2, 8, 32
    MID, G, FOUT = 64, 1, 128

    key = jax.random.PRNGKey(0)
    kx, k1, k2, k3, kx2 = jax.random.split(key, 5)

    x = jax.random.normal(kx, (B, S, H), jnp.float32)
    w1, b1 = _init_linear(k1, H, MID)        # mlp.fc.linear
    w2, b2 = _init_linear(k2, MID, G)        # mlp.linear
    wm, bm = _init_linear(k3, H * G, FOUT)   # linear_merge
    params = (w1, b1, w2, b2, wm, bm)

    ref = attflat_ref(x, params)

    # 1) f32 debug path (f32 matmuls, exact GELU, exact softmax divide): tight tol.
    out_f32 = jax.block_until_ready(
        attflat(x, params, mm_dtype=jnp.float32, approx_softmax_recip=False))
    assert out_f32.shape == (B, FOUT)
    np.testing.assert_allclose(np.asarray(out_f32), np.asarray(ref),
                               rtol=1e-4, atol=1e-4)

    # 2) default perf path (bf16 MXU operands, approx softmax reciprocal).
    out = jax.block_until_ready(attflat(x, params))
    np.testing.assert_allclose(np.asarray(out), np.asarray(ref), rtol=2e-2, atol=2e-2)

    # 3) multi-block grid with a padded last block (B % block_b != 0).
    B2 = 24
    x2 = jax.random.normal(kx2, (B2, S, H), jnp.float32)
    out2 = jax.block_until_ready(attflat(x2, params, block_b=16))
    ref2 = attflat_ref(x2, params)
    np.testing.assert_allclose(np.asarray(out2), np.asarray(ref2), rtol=2e-2, atol=2e-2)

    print("KERNEL_OK")
</pallas_src>

<mosaic_0001>
module attributes {stable_mosaic.version = 11 : i64} {
  func.func @attflat_kernel(%arg0: i32, %arg1: memref<2x8x32xf32, #tpu.memory_space<vmem>>, %arg2: memref<32x64xf32, #tpu.memory_space<vmem>>, %arg3: memref<1x64xf32, #tpu.memory_space<vmem>>, %arg4: memref<1x64xf32, #tpu.memory_space<vmem>>, %arg5: memref<32x128xf32, #tpu.memory_space<vmem>>, %arg6: memref<1x128xf32, #tpu.memory_space<vmem>>, %arg7: memref<2x128xf32, #tpu.memory_space<vmem>>) attributes {dimension_semantics = [#tpu.dimension_semantics<parallel>], iteration_bounds = array<i64: 1>, scalar_prefetch = 0 : i64, scratch_operands = 0 : i64, tpu.core_type = #tpu.core_type<tc>, window_params = [{transform_indices = @transform_0, window_bounds = array<i64: 2, 8, 32>}, {pipeline_mode = #tpu.pipeline_mode<synchronous>, transform_indices = @transform_1, window_bounds = array<i64: 32, 64>}, {pipeline_mode = #tpu.pipeline_mode<synchronous>, transform_indices = @transform_2, window_bounds = array<i64: 1, 64>}, {pipeline_mode = #tpu.pipeline_mode<synchronous>, transform_indices = @transform_3, window_bounds = array<i64: 1, 64>}, {pipeline_mode = #tpu.pipeline_mode<synchronous>, transform_indices = @transform_4, window_bounds = array<i64: 32, 128>}, {pipeline_mode = #tpu.pipeline_mode<synchronous>, transform_indices = @transform_5, window_bounds = array<i64: 1, 128>}, {transform_indices = @transform_6, window_bounds = array<i64: 2, 128>}]} {
    %c0 = arith.constant 0 : index
    %c0_0 = arith.constant 0 : index
    %c0_1 = arith.constant 0 : index
    %0 = vector.load %arg1[%c0, %c0_0, %c0_1] : memref<2x8x32xf32, #tpu.memory_space<vmem>>, vector<2x8x32xf32>
    %1 = vector.shape_cast %0 : vector<2x8x32xf32> to vector<16x32xf32>
    %c0_2 = arith.constant 0 : index
    %c0_3 = arith.constant 0 : index
    %2 = vector.load %arg2[%c0_2, %c0_3] : memref<32x64xf32, #tpu.memory_space<vmem>>, vector<32x64xf32>
    %cst = arith.constant dense<0.000000e+00> : vector<16x64xf32>
    %3 = tpu.matmul %1, %2, %cst {dimension_numbers = #tpu.dot_dimension_numbers<[1], [0], [0], [1], [0, 0, 1, 1], [], []>} : vector<16x32xf32>, vector<32x64xf32>, vector<16x64xf32> -> vector<16x64xf32>
    %c0_4 = arith.constant 0 : index
    %c0_5 = arith.constant 0 : index
    %4 = vector.load %arg3[%c0_4, %c0_5] : memref<1x64xf32, #tpu.memory_space<vmem>>, vector<1x64xf32>
    %5 = vector.broadcast %4 : vector<1x64xf32> to vector<16x64xf32>
    %6 = arith.addf %3, %5 : vector<16x64xf32>
    %cst_6 = arith.constant 5.000000e-01 : f32
    %7 = vector.broadcast %cst_6 : f32 to vector<16x64xf32>
    %8 = arith.mulf %7, %6 : vector<16x64xf32>
    %cst_7 = arith.constant 0.707106769 : f32
    %9 = vector.broadcast %cst_7 : f32 to vector<16x64xf32>
    %10 = arith.mulf %6, %9 : vector<16x64xf32>
    %11 = math.erf %10 : vector<16x64xf32>
    %cst_8 = arith.constant 1.000000e+00 : f32
    %12 = vector.broadcast %cst_8 : f32 to vector<16x64xf32>
    %13 = arith.addf %12, %11 : vector<16x64xf32>
    %14 = arith.mulf %8, %13 : vector<16x64xf32>
    %15 = vector.shape_cast %14 : vector<16x64xf32> to vector<2x8x64xf32>
    %c0_9 = arith.constant 0 : index
    %c0_10 = arith.constant 0 : index
    %16 = vector.load %arg4[%c0_9, %c0_10] : memref<1x64xf32, #tpu.memory_space<vmem>>, vector<1x64xf32>
    %17 = vector.shape_cast %16 : vector<1x64xf32> to vector<1x1x64xf32>
    %18 = vector.broadcast %17 : vector<1x1x64xf32> to vector<2x8x64xf32>
    %19 = arith.mulf %15, %18 : vector<2x8x64xf32>
    %cst_11 = arith.constant dense<0.000000e+00> : vector<2x8xf32>
    %20 = vector.multi_reduction <add>, %19, %cst_11 [2] : vector<2x8x64xf32> to vector<2x8xf32>
    %cst_12 = arith.constant dense<0xFF800000> : vector<2xf32>
    %21 = vector.multi_reduction <maximumf>, %20, %cst_12 [1] : vector<2x8xf32> to vector<2xf32>
    %22 = vector.shape_cast %21 : vector<2xf32> to vector<2x1xf32>
    %23 = vector.broadcast %22 : vector<2x1xf32> to vector<2x8xf32>
    %24 = arith.subf %20, %23 : vector<2x8xf32>
    %25 = math.exp %24 : vector<2x8xf32>
    %cst_13 = arith.constant dense<0.000000e+00> : vector<2xf32>
    %26 = vector.multi_reduction <add>, %25, %cst_13 [1] : vector<2x8xf32> to vector<2xf32>
    %27 = vector.shape_cast %26 : vector<2xf32> to vector<2x1xf32>
    %28 = vector.broadcast %27 : vector<2x1xf32> to vector<2x8xf32>
    %29 = arith.divf %25, %28 : vector<2x8xf32>
    %30 = vector.shape_cast %29 : vector<2x8xf32> to vector<2x8x1xf32>
    %31 = vector.broadcast %30 : vector<2x8x1xf32> to vector<2x8x32xf32>
    %32 = arith.mulf %31, %0 : vector<2x8x32xf32>
    %cst_14 = arith.constant dense<0.000000e+00> : vector<2x32xf32>
    %33 = vector.multi_reduction <add>, %32, %cst_14 [1] : vector<2x8x32xf32> to vector<2x32xf32>
    %c0_15 = arith.constant 0 : index
    %c0_16 = arith.constant 0 : index
    %34 = vector.load %arg5[%c0_15, %c0_16] : memref<32x128xf32, #tpu.memory_space<vmem>>, vector<32x128xf32>
    %cst_17 = arith.constant dense<0.000000e+00> : vector<2x128xf32>
    %35 = tpu.matmul %33, %34, %cst_17 {dimension_numbers = #tpu.dot_dimension_numbers<[1], [0], [0], [1], [0, 0, 1, 1], [], []>} : vector<2x32xf32>, vector<32x128xf32>, vector<2x128xf32> -> vector<2x128xf32>
    %c0_18 = arith.constant 0 : index
    %c0_19 = arith.constant 0 : index
    %36 = vector.load %arg6[%c0_18, %c0_19] : memref<1x128xf32, #tpu.memory_space<vmem>>, vector<1x128xf32>
    %37 = vector.broadcast %36 : vector<1x128xf32> to vector<2x128xf32>
    %38 = arith.addf %35, %37 : vector<2x128xf32>
    %c0_20 = arith.constant 0 : index
    %c0_21 = arith.constant 0 : index
    %39 = vector.load %arg7[%c0_20, %c0_21] : memref<2x128xf32, #tpu.memory_space<vmem>>, vector<2x128xf32>
    tpu.vector_store %arg7[%c0_20, %c0_21], %38 {strides = array<i32>} : memref<2x128xf32, #tpu.memory_space<vmem>>, vector<2x128xf32>,
    return
  }
  func.func @transform_0(%arg0: i32) -> (i32, i32, i32) {
    %c0_i32 = arith.constant 0 : i32
    %c0_i32_0 = arith.constant 0 : i32
    %c0_i32_1 = arith.constant 0 : i32
    return %arg0, %c0_i32, %c0_i32_0 : i32, i32, i32
  }
  func.func @transform_1(%arg0: i32) -> (i32, i32) {
    %c0_i32 = arith.constant 0 : i32
    %c0_i32_0 = arith.constant 0 : i32
    %c0_i32_1 = arith.constant 0 : i32
    return %c0_i32, %c0_i32_0 : i32, i32
  }
  func.func @transform_2(%arg0: i32) -> (i32, i32) {
    %c0_i32 = arith.constant 0 : i32
    %c0_i32_0 = arith.constant 0 : i32
    %c0_i32_1 = arith.constant 0 : i32
    return %c0_i32, %c0_i32_0 : i32, i32
  }
  func.func @transform_3(%arg0: i32) -> (i32, i32) {
    %c0_i32 = arith.constant 0 : i32
    %c0_i32_0 = arith.constant 0 : i32
    %c0_i32_1 = arith.constant 0 : i32
    return %c0_i32, %c0_i32_0 : i32, i32
  }
  func.func @transform_4(%arg0: i32) -> (i32, i32) {
    %c0_i32 = arith.constant 0 : i32
    %c0_i32_0 = arith.constant 0 : i32
    %c0_i32_1 = arith.constant 0 : i32
    return %c0_i32, %c0_i32_0 : i32, i32
  }
  func.func @transform_5(%arg0: i32) -> (i32, i32) {
    %c0_i32 = arith.constant 0 : i32
    %c0_i32_0 = arith.constant 0 : i32
    %c0_i32_1 = arith.constant 0 : i32
    return %c0_i32, %c0_i32_0 : i32, i32
  }
  func.func @transform_6(%arg0: i32) -> (i32, i32) {
    %c0_i32 = arith.constant 0 : i32
    %c0_i32_0 = arith.constant 0 : i32
    return %arg0, %c0_i32 : i32, i32
  }
}

module attributes {stable_mosaic.version = 11 : i64} {
  func.func @attflat_kernel(%arg0: i32, %arg1: memref<2x8x32xf32, #tpu.memory_space<vmem>>, %arg2: memref<32x64xf32, #tpu.memory_space<vmem>>, %arg3: memref<1x64xf32, #tpu.memory_space<vmem>>, %arg4: memref<1x64xf32, #tpu.memory_space<vmem>>, %arg5: memref<32x128xf32, #tpu.memory_space<vmem>>, %arg6: memref<1x128xf32, #tpu.memory_space<vmem>>, %arg7: memref<2x128xf32, #tpu.memory_space<vmem>>) attributes {dimension_semantics = [#tpu.dimension_semantics<parallel>], iteration_bounds = array<i64: 1>, scalar_prefetch = 0 : i64, scratch_operands = 0 : i64, tpu.core_type = #tpu.core_type<tc>, window_params = [{transform_indices = @transform_0, window_bounds = array<i64: 2, 8, 32>}, {pipeline_mode = #tpu.pipeline_mode<synchronous>, transform_indices = @transform_1, window_bounds = array<i64: 32, 64>}, {pipeline_mode = #tpu.pipeline_mode<synchronous>, transform_indices = @transform_2, window_bounds = array<i64: 1, 64>}, {pipeline_mode = #tpu.pipeline_mode<synchronous>, transform_indices = @transform_3, window_bounds = array<i64: 1, 64>}, {pipeline_mode = #tpu.pipeline_mode<synchronous>, transform_indices = @transform_4, window_bounds = array<i64: 32, 128>}, {pipeline_mode = #tpu.pipeline_mode<synchronous>, transform_indices = @transform_5, window_bounds = array<i64: 1, 128>}, {transform_indices = @transform_6, window_bounds = array<i64: 2, 128>}]} {
    %c0 = arith.constant 0 : index
    %c0_0 = arith.constant 0 : index
    %c0_1 = arith.constant 0 : index
    %0 = vector.load %arg1[%c0, %c0_0, %c0_1] : memref<2x8x32xf32, #tpu.memory_space<vmem>>, vector<2x8x32xf32>
    %1 = vector.shape_cast %0 : vector<2x8x32xf32> to vector<16x32xf32>
    %c0_2 = arith.constant 0 : index
    %c0_3 = arith.constant 0 : index
    %2 = vector.load %arg2[%c0_2, %c0_3] : memref<32x64xf32, #tpu.memory_space<vmem>>, vector<32x64xf32>
    %cst = arith.constant dense<0.000000e+00> : vector<16x64xf32>
    %3 = tpu.matmul %1, %2, %cst {dimension_numbers = #tpu.dot_dimension_numbers<[1], [0], [0], [1], [0, 0, 1, 1], [], []>} : vector<16x32xf32>, vector<32x64xf32>, vector<16x64xf32> -> vector<16x64xf32>
    %c0_4 = arith.constant 0 : index
    %c0_5 = arith.constant 0 : index
    %4 = vector.load %arg3[%c0_4, %c0_5] : memref<1x64xf32, #tpu.memory_space<vmem>>, vector<1x64xf32>
    %5 = vector.broadcast %4 : vector<1x64xf32> to vector<16x64xf32>
    %6 = arith.addf %3, %5 : vector<16x64xf32>
    %cst_6 = arith.constant 5.000000e-01 : f32
    %7 = vector.broadcast %cst_6 : f32 to vector<16x64xf32>
    %8 = arith.mulf %7, %6 : vector<16x64xf32>
    %cst_7 = arith.constant 0.707106769 : f32
    %9 = vector.broadcast %cst_7 : f32 to vector<16x64xf32>
    %10 = arith.mulf %6, %9 : vector<16x64xf32>
    %11 = math.erf %10 : vector<16x64xf32>
    %cst_8 = arith.constant 1.000000e+00 : f32
    %12 = vector.broadcast %cst_8 : f32 to vector<16x64xf32>
    %13 = arith.addf %12, %11 : vector<16x64xf32>
    %14 = arith.mulf %8, %13 : vector<16x64xf32>
    %15 = vector.shape_cast %14 : vector<16x64xf32> to vector<2x8x64xf32>
    %c0_9 = arith.constant 0 : index
    %c0_10 = arith.constant 0 : index
    %16 = vector.load %arg4[%c0_9, %c0_10] : memref<1x64xf32, #tpu.memory_space<vmem>>, vector<1x64xf32>
    %17 = vector.shape_cast %16 : vector<1x64xf32> to vector<1x1x64xf32>
    %18 = vector.broadcast %17 : vector<1x1x64xf32> to vector<2x8x64xf32>
    %19 = arith.mulf %15, %18 : vector<2x8x64xf32>
    %cst_11 = arith.constant dense<0.000000e+00> : vector<2x8xf32>
    %20 = vector.multi_reduction <add>, %19, %cst_11 [2] : vector<2x8x64xf32> to vector<2x8xf32>
    %cst_12 = arith.constant dense<0xFF800000> : vector<2xf32>
    %21 = vector.multi_reduction <maximumf>, %20, %cst_12 [1] : vector<2x8xf32> to vector<2xf32>
    %22 = vector.shape_cast %21 : vector<2xf32> to vector<2x1xf32>
    %23 = vector.broadcast %22 : vector<2x1xf32> to vector<2x8xf32>
    %24 = arith.subf %20, %23 : vector<2x8xf32>
    %25 = math.exp %24 : vector<2x8xf32>
    %cst_13 = arith.constant dense<0.000000e+00> : vector<2xf32>
    %26 = vector.multi_reduction <add>, %25, %cst_13 [1] : vector<2x8xf32> to vector<2xf32>
    %27 = vector.shape_cast %26 : vector<2xf32> to vector<2x1xf32>
    %28 = vector.broadcast %27 : vector<2x1xf32> to vector<2x8xf32>
    %29 = arith.divf %25, %28 : vector<2x8xf32>
    %30 = vector.shape_cast %29 : vector<2x8xf32> to vector<2x8x1xf32>
    %31 = vector.broadcast %30 : vector<2x8x1xf32> to vector<2x8x32xf32>
    %32 = arith.mulf %31, %0 : vector<2x8x32xf32>
    %cst_14 = arith.constant dense<0.000000e+00> : vector<2x32xf32>
    %33 = vector.multi_reduction <add>, %32, %cst_14 [1] : vector<2x8x32xf32> to vector<2x32xf32>
    %c0_15 = arith.constant 0 : index
    %c0_16 = arith.constant 0 : index
    %34 = vector.load %arg5[%c0_15, %c0_16] : memref<32x128xf32, #tpu.memory_space<vmem>>, vector<32x128xf32>
    %cst_17 = arith.constant dense<0.000000e+00> : vector<2x128xf32>
    %35 = tpu.matmul %33, %34, %cst_17 {dimension_numbers = #tpu.dot_dimension_numbers<[1], [0], [0], [1], [0, 0, 1, 1], [], []>} : vector<2x32xf32>, vector<32x128xf32>, vector<2x128xf32> -> vector<2x128xf32>
    %c0_18 = arith.constant 0 : index
    %c0_19 = arith.constant 0 : index
    %36 = vector.load %arg6[%c0_18, %c0_19] : memref<1x128xf32, #tpu.memory_space<vmem>>, vector<1x128xf32>
    %37 = vector.broadcast %36 : vector<1x128xf32> to vector<2x128xf32>
    %38 = arith.addf %35, %37 : vector<2x128xf32>
    %c0_20 = arith.constant 0 : index
    %c0_21 = arith.constant 0 : index
    %39 = vector.load %arg7[%c0_20, %c0_21] : memref<2x128xf32, #tpu.memory_space<vmem>>, vector<2x128xf32>
    tpu.vector_store %arg7[%c0_20, %c0_21], %38 {strides = array<i32>} : memref<2x128xf32, #tpu.memory_space<vmem>>, vector<2x128xf32>,
    return
  }
  func.func @transform_0(%arg0: i32) -> (i32, i32, i32) {
    %c0_i32 = arith.constant 0 : i32
    %c0_i32_0 = arith.constant 0 : i32
    %c0_i32_1 = arith.constant 0 : i32
    return %arg0, %c0_i32, %c0_i32_0 : i32, i32, i32
  }
  func.func @transform_1(%arg0: i32) -> (i32, i32) {
    %c0_i32 = arith.constant 0 : i32
    %c0_i32_0 = arith.constant 0 : i32
    %c0_i32_1 = arith.constant 0 : i32
    return %c0_i32, %c0_i32_0 : i32, i32
  }
  func.func @transform_2(%arg0: i32) -> (i32, i32) {
    %c0_i32 = arith.constant 0 : i32
    %c0_i32_0 = arith.constant 0 : i32
    %c0_i32_1 = arith.constant 0 : i32
    return %c0_i32, %c0_i32_0 : i32, i32
  }
  func.func @transform_3(%arg0: i32) -> (i32, i32) {
    %c0_i32 = arith.constant 0 : i32
    %c0_i32_0 = arith.constant 0 : i32
    %c0_i32_1 = arith.constant 0 : i32
    return %c0_i32, %c0_i32_0 : i32, i32
  }
  func.func @transform_4(%arg0: i32) -> (i32, i32) {
    %c0_i32 = arith.constant 0 : i32
    %c0_i32_0 = arith.constant 0 : i32
    %c0_i32_1 = arith.constant 0 : i32
    return %c0_i32, %c0_i32_0 : i32, i32
  }
  func.func @transform_5(%arg0: i32) -> (i32, i32) {
    %c0_i32 = arith.constant 0 : i32
    %c0_i32_0 = arith.constant 0 : i32
    %c0_i32_1 = arith.constant 0 : i32
    return %c0_i32, %c0_i32_0 : i32, i32
  }
  func.func @transform_6(%arg0: i32) -> (i32, i32) {
    %c0_i32 = arith.constant 0 : i32
    %c0_i32_0 = arith.constant 0 : i32
    return %arg0, %c0_i32 : i32, i32
  }
}

</mosaic_0001>

<llo_original>
// kernel: tpu_custom_call.1
$region0: #{tpu_custom_call.1}
  #allocation0 [shape = 'u32[]', space=smem, size = 0x4, offset = 0x4, fixed_abs, tag = 'smem constant byte address 0x4 - core index']
  #allocation1 [shape = 'u32[144,128]{1,0:T(1,128)}', space=vmem, size = 0x12000, scoped, tag = 'internal scratch']
  %s0 = inlined_call_operand.hbm [shape: f32[2,8,32], index: 0, kind: input, shape index: {}]
  %s1 = inlined_call_operand.hbm [shape: f32[32,64], index: 1, kind: input, shape index: {}]
  %s2 = inlined_call_operand.vmem [shape: f32[1,64], index: 2, kind: input, shape index: {}]
  %s3 = inlined_call_operand.vmem [shape: f32[1,64], index: 3, kind: input, shape index: {}]
  %s4 = inlined_call_operand.hbm [shape: f32[32,128], index: 4, kind: input, shape index: {}]
  %s5 = inlined_call_operand.vmem [shape: f32[1,128], index: 5, kind: input, shape index: {}]
  %s6 = inlined_call_operand.hbm [shape: f32[2,128], index: 6, kind: output, shape index: {}]
  %s7 = sld [smem:[#allocation0]]
  $region46: #{tpu_custom_call.1} parent=0
    _
  %s9 = ssub.s32 1, %s7
  %s10 = scalar_select 0, %s9, %s7
  $region1: #{tpu_custom_call.1} parent=0
    #allocation2 [shape = 'u8[8192]{0}', space=vmem, size = 0x2000, scoped, tag = 'input window, operand 0, single buffered']
    #allocation3 [shape = 's32[1]{0}', space=sflag, size = 0x4, scoped, tag = 'scoped memory for tpu_custom_call.1']
    #allocation4 [shape = 's32[1]{0}', space=sflag, size = 0x4, scoped, tag = 'scoped memory for tpu_custom_call.1']
    #allocation5 [shape = 'u8[16384]{0}', space=vmem, size = 0x4000, scoped, tag = 'input window, operand 1, single buffered']
    #allocation6 [shape = 's32[1]{0}', space=sflag, size = 0x4, scoped, tag = 'scoped memory for tpu_custom_call.1']
    #allocation7 [shape = 'u8[16384]{0}', space=vmem, size = 0x4000, scoped, tag = 'input window, operand 4, single buffered']
    #allocation8 [shape = 'u8[1024]{0}', space=vmem, size = 0x400, scoped, tag = 'output window, operand 0, single buffered']
    %11 = vsyncpa [#allocation3], 0
    %12 = vsyncpa [#allocation6], 0
    %13 = vsyncpa [#allocation4], 0
    // Predicated region
    $region2: #{tpu_custom_call.1} parent=1 // pred_check
      _
    $region3: #{tpu_custom_call.1} parent=1 // pred_check_branch
      %15 = sbr.rel (0) target = $region5
    $region4: #{tpu_custom_call.1} parent=1 // pred_region
      %s17 = ssub.s32 256, 256
      %18 = vsyncadd [#allocation3], %s17
      %s19 = sshll.u32 [#allocation2], 4
      %s20 = int_to_ptr.vmem [resolvable:$true] %s19
      %25 = dma.hbm_to_vmem [thread:$0]  %s0, 256, %s20, [#allocation3], 128, 128, 8
    $region5: #{tpu_custom_call.1} parent=1 // pred_fallthru
      _
    // Predicated region
    $region6: #{tpu_custom_call.1} parent=1 // pred_check
      _
    $region7: #{tpu_custom_call.1} parent=1 // pred_check_branch
      %27 = sbr.rel (0) target = $region9
    $region8: #{tpu_custom_call.1} parent=1 // pred_region
      %s29 = ssub.s32 512, 512
      %30 = vsyncadd [#allocation6], %s29
      %s31 = sshll.u32 [#allocation5], 4
      %s32 = int_to_ptr.vmem [resolvable:$true] %s31
      %37 = dma.hbm_to_vmem [thread:$0]  %s1, 512, %s32, [#allocation6], 128, 128, 8
    $region9: #{tpu_custom_call.1} parent=1 // pred_fallthru
      _
    // Predicated region
    $region10: #{tpu_custom_call.1} parent=1 // pred_check
      _
    $region11: #{tpu_custom_call.1} parent=1 // pred_check_branch
      %39 = sbr.rel (0) target = $region13
    $region12: #{tpu_custom_call.1} parent=1 // pred_region
      _
    $region13: #{tpu_custom_call.1} parent=1 // pred_fallthru
      _
    // Predicated region
    $region14: #{tpu_custom_call.1} parent=1 // pred_check
      _
    $region15: #{tpu_custom_call.1} parent=1 // pred_check_branch
      %41 = sbr.rel (0) target = $region17
    $region16: #{tpu_custom_call.1} parent=1 // pred_region
      _
    $region17: #{tpu_custom_call.1} parent=1 // pred_fallthru
      _
    // Predicated region
    $region18: #{tpu_custom_call.1} parent=1 // pred_check
      _
    $region19: #{tpu_custom_call.1} parent=1 // pred_check_branch
      %43 = sbr.rel (0) target = $region21
    $region20: #{tpu_custom_call.1} parent=1 // pred_region
      %s45 = ssub.s32 512, 512
      %46 = vsyncadd [#allocation6], %s45
      %s47 = sshll.u32 [#allocation7], 4
      %s48 = int_to_ptr.vmem [resolvable:$true] %s47
      %53 = dma.hbm_to_vmem [thread:$0]  %s4, 512, %s48, [#allocation6], 128, 128, 8
    $region21: #{tpu_custom_call.1} parent=1 // pred_fallthru
      _
    // Predicated region
    $region22: #{tpu_custom_call.1} parent=1 // pred_check
      _
    $region23: #{tpu_custom_call.1} parent=1 // pred_check_branch
      %55 = sbr.rel (0) target = $region25
    $region24: #{tpu_custom_call.1} parent=1 // pred_region
      _
    $region25: #{tpu_custom_call.1} parent=1 // pred_fallthru
      _
    // Predicated region
    $region26: #{tpu_custom_call.1} parent=1 // pred_check
      _
    $region27: #{tpu_custom_call.1} parent=1 // pred_check_branch
      %57 = sbr.rel (0) target = $region29
    $region28: #{tpu_custom_call.1} parent=1 // pred_region
      %58 = dma.done [#allocation3], 256
    $region29: #{tpu_custom_call.1} parent=1 // pred_fallthru
      _
    // Predicated region
    $region30: #{tpu_custom_call.1} parent=1 // pred_check
      _
    $region31: #{tpu_custom_call.1} parent=1 // pred_check_branch
      %60 = sbr.rel (0) target = $region33
    $region32: #{tpu_custom_call.1} parent=1 // pred_region
      %61 = dma.done [#allocation6], 512
    $region33: #{tpu_custom_call.1} parent=1 // pred_fallthru
      _
    // Predicated region
    $region34: #{tpu_custom_call.1} parent=1 // pred_check
      _
    $region35: #{tpu_custom_call.1} parent=1 // pred_check_branch
      %63 = sbr.rel (0) target = $region37
    $region36: #{tpu_custom_call.1} parent=1 // pred_region
      %64 = dma.done [#allocation6], 512
    $region37: #{tpu_custom_call.1} parent=1 // pred_fallthru
      _
    %v65 = vld [vmem:[#allocation2] sm:$0xff]
    %v66 = vld [vmem:[#allocation2 + $0x8] sm:$0xff]
    %v67 = vld [vmem:[#allocation5] sm:$0xff]
    %v68 = vld [vmem:[#allocation5 + $0x8] sm:$0xff]
    %v69 = vld [vmem:[#allocation5 + $0x10] sm:$0xff]
    %v70 = vld [vmem:[#allocation5 + $0x18] sm:$0xff]
    %v71 = vld [vmem:[%s2] sm:$0x1]
    %v73 = vlaneseq
    %v74 = vshrl.u32 %v73, 7
    %v75 = vsub.s32 0, %v74
    %v76 = vrot.slane %v71, %v75
    %vm78 = vcmask 261120
    %v80 = vsel %vm78, %v65, 0
    %v83 = vsel %vm78, %v66, 0
    %85 = vmatprep.subr.mxu0 0.0
    %86 = vmatpush1.msra.mxu0 %v67
    %87 = vmatprep.subr.mxu0 0.0
    %88 = vmatpush1.msra.mxu0 %v68
    %89 = vmatprep.subr.mxu0 0.0
    %90 = vmatpush1.msra.mxu0 %v69
    %91 = vmatprep.subr.mxu0 0.0
    %92 = vmatpush1.msra.mxu0 %v70
    %93 = vmatprep.subr.mxu0 0.0
    %94 = vmatpush1.msra.mxu0 0.0
    %95 = vmatprep.subr.mxu0 0.0
    %96 = vmatpush1.msra.mxu0 0.0
    %97 = vmatprep.subr.mxu0 0.0
    %98 = vmatpush1.msra.mxu0 0.0
    %99 = vmatprep.subr.mxu0 0.0
    %100 = vmatpush1.msra.mxu0 0.0
    %101 = vmatprep.subr.mxu0 0.0
    %102 = vmatpush1.msra.mxu0 0.0
    %103 = vmatprep.subr.mxu0 0.0
    %104 = vmatpush1.msra.mxu0 0.0
    %105 = vmatprep.subr.mxu0 0.0
    %106 = vmatpush1.msra.mxu0 0.0
    %107 = vmatprep.subr.mxu0 0.0
    %108 = vmatpush1.msra.mxu0 0.0
    %109 = vmatprep.subr.mxu0 0.0
    %110 = vmatpush1.msra.mxu0 0.0
    %111 = vmatprep.subr.mxu0 0.0
    %112 = vmatpush1.msra.mxu0 0.0
    %113 = vmatprep.subr.mxu0 0.0
    %114 = vmatpush1.msra.mxu0 0.0
    %115 = vmatprep.subr.mxu0 0.0
    %116 = vmatpush1.msra.mxu0 0.0
    %117 = vmatprep.subr.mxu0 0.0
    %118 = vmatpush1.msra.mxu0 0.0
    %119 = vmatprep.subr.mxu0 0.0
    %120 = vmatpush1.msra.mxu0 0.0
    %121 = vmatprep.subr.mxu0 0.0
    %122 = vmatpush1.msra.mxu0 0.0
    %123 = vmatprep.subr.mxu0 0.0
    %124 = vmatpush1.msra.mxu0 0.0
    %125 = vmatprep.subr.mxu0 0.0
    %126 = vmatpush1.msra.mxu0 0.0
    %127 = vmatprep.subr.mxu0 0.0
    %128 = vmatpush1.msra.mxu0 0.0
    %129 = vmatprep.subr.mxu0 0.0
    %130 = vmatpush1.msra.mxu0 0.0
    %131 = vmatprep.subr.mxu0 0.0
    %132 = vmatpush1.msra.mxu0 0.0
    %133 = vmatprep.subr.mxu0 0.0
    %134 = vmatpush1.msra.mxu0 0.0
    %135 = vmatprep.subr.mxu0 0.0
    %136 = vmatpush1.msra.mxu0 0.0
    %137 = vmatprep.subr.mxu0 0.0
    %138 = vmatpush1.msra.mxu0 0.0
    %139 = vmatprep.subr.mxu0 0.0
    %140 = vmatpush1.msra.mxu0 0.0
    %141 = vmatprep.subr.mxu0 0.0
    %142 = vmatpush1.msra.mxu0 0.0
    %143 = vmatprep.subr.mxu0 0.0
    %144 = vmatpush1.msra.mxu0 0.0
    %145 = vmatprep.subr.mxu0 0.0
    %146 = vmatpush1.msra.mxu0 0.0
    %147 = vmatprep.subr.mxu0 0.0
    %148 = vmatpush1.msra.mxu0 0.0
    %149 = vmatprep.mubr.f32.mxu0 0.0
    %150 = vmatmul.mubr.f32.gmra.mrb[0].mxu0 %v80
    %v151 = vpop.f32.mrb[0].mxu0
    %v152 = vadd.f32 %v76, %v151
    %v153 = vpop.f32.mrb[0].mxu0
    %154 = vmatprep.mubr.f32.mxu0 0.0
    %155 = vmatmul.mubr.f32.gmra.mrb[0].mxu0 %v83
    %v156 = vpop.f32.mrb[0].mxu0
    %v157 = vadd.f32 %v76, %v156
    %v158 = vpop.f32.mrb[0].mxu0
    %159 = vdwg.mxu0
    %v160 = vmul.f32 %v152, 0.5
    %v161 = vmul.f32 %v157, 0.5
    %v162 = vmul.f32 %v152, 0.70710677
    %v163 = vmul.f32 %v157, 0.70710677
    %v164 = verf.f32.pop %v162
    %v165 = verf.f32.pop %v163
    %v166 = vadd.f32 %v164, 1.0
    %v167 = vadd.f32 %v165, 1.0
    %v168 = vmul.f32 %v160, %v166
    %v169 = vmul.f32 %v161, %v167
    %v170 = vld [vmem:[%s3] sm:$0x1]
    %v172 = vlaneseq
    %v173 = vshrl.u32 %v172, 7
    %v174 = vsub.s32 0, %v173
    %v175 = vrot.slane %v170, %v174
    %v177 = vmul.f32 %v168, %v175
    %v178 = vmul.f32 %v169, %v175
    %vm179 = vcmask 523264
    %v180 = vsel %vm179, %v177, 0.0
    %181 = vadd.xlane.f32.xlu0 %v180
    %v182 = vpop.xlane.xlu0 %181
    %v183 = vsel %vm179, %v178, 0.0
    %184 = vadd.xlane.f32.xlu0 %v183
    %v185 = vpop.xlane.xlu0 %184
    %v188 = vlaneseq
    %v189 = vand.u32 %v188, 127
    %v190 = vlaneseq
    %v191 = vshrl.u32 %v190, 7
    %v192 = vsub.s32 %v189, %v191
    %v193 = vrot.slane %v182, %v192
    %v194 = vlaneseq
    %v195 = vshrl.u32 %v194, 7
    %v196 = vsub.s32 %v189, %v195
    %v197 = vrot.slane %v185, %v196
    %vm198 = vcmask 1041409
    %v199 = vsel %vm198, %v197, %v193
    %vm201 = vcmask 58368
    %v202 = vsel %vm201, %v199, -inf
    %203 = vmax.xlane.f32.xlu0 %v202
    %v204 = vpop.xlane.xlu0 %203
    %v206 = vlaneseq
    %v207 = vshrl.u32 %v206, 7
    %v208 = vsub.s32 0, %v207
    %v209 = vrot.slane %v204, %v208
    %v210 = vlaneseq
    %v211 = vshrl.u32 %v210, 7
    %v212 = vsub.s32 1, %v211
    %v213 = vrot.slane %v204, %v212
    %v216 = vsub.f32 %v182, %v209
    %v217 = vsub.f32 %v185, %v213
    %v218 = vmul.f32 %v216, 1.442695
    %v219 = vpow.pop %v218
    %v220 = vmul.f32 %v217, 1.442695
    %v221 = vpow.pop %v220
    %224 = vset.pattern.permute.xlu0 0
    %225 = vperm.xlu0 %224, %v219
    %v226 = vpop.permute.xlu0 %225
    %227 = vset.pattern.permute.xlu0 0
    %228 = vperm.xlu0 %227, %v221
    %v229 = vpop.permute.xlu0 %228
    %v230 = vlaneseq
    %v231 = vshrl.u32 %v230, 7
    %v232 = vsub.s32 %v189, %v231
    %v233 = vrot.slane %v226, %v232
    %v234 = vlaneseq
    %v235 = vshrl.u32 %v234, 7
    %v236 = vsub.s32 %v189, %v235
    %v237 = vrot.slane %v229, %v236
    %v238 = vsel %vm198, %v237, %v233
    %v240 = vsel %vm201, %v238, 0.0
    %241 = vadd.xlane.f32.xlu0 %v240
    %v242 = vpop.xlane.xlu0 %241
    %v244 = vlaneseq
    %v245 = vshrl.u32 %v244, 7
    %v246 = vsub.s32 0, %v245
    %v247 = vrot.slane %v242, %v246
    %v248 = vlaneseq
    %v249 = vshrl.u32 %v248, 7
    %v250 = vsub.s32 1, %v249
    %v251 = vrot.slane %v242, %v250
    %v254 = vrcp.pop %v247
    %v255 = vmul.f32 %v219, %v254
    %v256 = vrcp.pop %v251
    %v257 = vmul.f32 %v221, %v256
    %259 = vset.pattern.permute.xlu0 0
    %260 = vperm.xlu0 %259, %v255
    %v261 = vpop.permute.xlu0 %260
    %264 = vset.pattern.permute.xlu0 0
    %265 = vperm.xlu0 %264, %v257
    %v266 = vpop.permute.xlu0 %265
    %v268 = vmul.f32 %v261, %v65
    %v269 = vmul.f32 %v266, %v66
    %v270 = vsel %vm78, %v268, 0.0
    %v271 = vrot.slane %v270, 4
    %v272 = vadd.f32 %v270, %v271
    %v273 = vrot.slane %v272, 2
    %v274 = vadd.f32 %v272, %v273
    %v275 = vrot.slane %v274, 1
    %v276 = vadd.f32 %v274, %v275
    %v277 = vsel %vm78, %v269, 0.0
    %v278 = vrot.slane %v277, 4
    %v279 = vadd.f32 %v277, %v278
    %v280 = vrot.slane %v279, 2
    %v281 = vadd.f32 %v279, %v280
    %v282 = vrot.slane %v281, 1
    %v283 = vadd.f32 %v281, %v282
    %v284 = vld [vmem:[#allocation7] sm:$0xff]
    %v285 = vld [vmem:[#allocation7 + $0x8] sm:$0xff]
    %v286 = vld [vmem:[#allocation7 + $0x10] sm:$0xff]
    %v287 = vld [vmem:[#allocation7 + $0x18] sm:$0xff]
    %v288 = vld [vmem:[%s5] sm:$0x1]
    %v290 = vlaneseq
    %v291 = vshrl.u32 %v290, 7
    %v292 = vsub.s32 0, %v291
    %v293 = vrot.slane %v288, %v292
    %v297 = vsel %vm198, %v283, %v276
    %v298 = vsel %vm78, %v297, 0
    %300 = vmatprep.subr.mxu0 0.0
    %301 = vmatpush1.msra.mxu0 %v284
    %302 = vmatprep.subr.mxu0 0.0
    %303 = vmatpush1.msra.mxu0 %v285
    %304 = vmatprep.subr.mxu0 0.0
    %305 = vmatpush1.msra.mxu0 %v286
    %306 = vmatprep.subr.mxu0 0.0
    %307 = vmatpush1.msra.mxu0 %v287
    %308 = vmatprep.subr.mxu0 0.0
    %309 = vmatpush1.msra.mxu0 0.0
    %310 = vmatprep.subr.mxu0 0.0
    %311 = vmatpush1.msra.mxu0 0.0
    %312 = vmatprep.subr.mxu0 0.0
    %313 = vmatpush1.msra.mxu0 0.0
    %314 = vmatprep.subr.mxu0 0.0
    %315 = vmatpush1.msra.mxu0 0.0
    %316 = vmatprep.subr.mxu0 0.0
    %317 = vmatpush1.msra.mxu0 0.0
    %318 = vmatprep.subr.mxu0 0.0
    %319 = vmatpush1.msra.mxu0 0.0
    %320 = vmatprep.subr.mxu0 0.0
    %321 = vmatpush1.msra.mxu0 0.0
    %322 = vmatprep.subr.mxu0 0.0
    %323 = vmatpush1.msra.mxu0 0.0
    %324 = vmatprep.subr.mxu0 0.0
    %325 = vmatpush1.msra.mxu0 0.0
    %326 = vmatprep.subr.mxu0 0.0
    %327 = vmatpush1.msra.mxu0 0.0
    %328 = vmatprep.subr.mxu0 0.0
    %329 = vmatpush1.msra.mxu0 0.0
    %330 = vmatprep.subr.mxu0 0.0
    %331 = vmatpush1.msra.mxu0 0.0
    %332 = vmatprep.subr.mxu0 0.0
    %333 = vmatpush1.msra.mxu0 0.0
    %334 = vmatprep.subr.mxu0 0.0
    %335 = vmatpush1.msra.mxu0 0.0
    %336 = vmatprep.subr.mxu0 0.0
    %337 = vmatpush1.msra.mxu0 0.0
    %338 = vmatprep.subr.mxu0 0.0
    %339 = vmatpush1.msra.mxu0 0.0
    %340 = vmatprep.subr.mxu0 0.0
    %341 = vmatpush1.msra.mxu0 0.0
    %342 = vmatprep.subr.mxu0 0.0
    %343 = vmatpush1.msra.mxu0 0.0
    %344 = vmatprep.subr.mxu0 0.0
    %345 = vmatpush1.msra.mxu0 0.0
    %346 = vmatprep.subr.mxu0 0.0
    %347 = vmatpush1.msra.mxu0 0.0
    %348 = vmatprep.subr.mxu0 0.0
    %349 = vmatpush1.msra.mxu0 0.0
    %350 = vmatprep.subr.mxu0 0.0
    %351 = vmatpush1.msra.mxu0 0.0
    %352 = vmatprep.subr.mxu0 0.0
    %353 = vmatpush1.msra.mxu0 0.0
    %354 = vmatprep.subr.mxu0 0.0
    %355 = vmatpush1.msra.mxu0 0.0
    %356 = vmatprep.subr.mxu0 0.0
    %357 = vmatpush1.msra.mxu0 0.0
    %358 = vmatprep.subr.mxu0 0.0
    %359 = vmatpush1.msra.mxu0 0.0
    %360 = vmatprep.subr.mxu0 0.0
    %361 = vmatpush1.msra.mxu0 0.0
    %362 = vmatprep.subr.mxu0 0.0
    %363 = vmatpush1.msra.mxu0 0.0
    %364 = vmatprep.mubr.f32.mxu0 0.0
    %365 = vmatmul.mubr.f32.gmra.mrb[0].mxu0 %v298
    %v366 = vpop.f32.mrb[0].mxu0
    %v367 = vadd.f32 %v293, %v366
    %v368 = vpop.f32.mrb[0].mxu0
    %369 = vdwg.mxu0
    %370 = vst [vmem:[#allocation8] sm:$0x3] %v367
    // Predicated region
    $region38: #{tpu_custom_call.1} parent=1 // pred_check
      _
    $region39: #{tpu_custom_call.1} parent=1 // pred_check_branch
      %372 = sbr.rel (0) target = $region41
    $region40: #{tpu_custom_call.1} parent=1 // pred_region
      %s374 = ssub.s32 32, 32
      %375 = vsyncadd [#allocation4], %s374
      %s377 = sshll.u32 [#allocation8], 4
      %s378 = int_to_ptr.vmem [resolvable:$true] %s377
      %380 = dma.vmem_to_hbm [thread:$0]  %s378, 32, %s6, [#allocation4]
    $region41: #{tpu_custom_call.1} parent=1 // pred_fallthru
      _
    // Predicated region
    $region42: #{tpu_custom_call.1} parent=1 // pred_check
      _
    $region43: #{tpu_custom_call.1} parent=1 // pred_check_branch
      %382 = sbr.rel (0) target = $region45
    $region44: #{tpu_custom_call.1} parent=1 // pred_region
      %383 = dma.done [#allocation4], 32
    $region45: #{tpu_custom_call.1} parent=1 // pred_fallthru
      _
    %384 = vsyncpa [#allocation3], 1
    %385 = vsyncpa [#allocation6], 1
    %386 = vsyncpa [#allocation4], 1

// kernel: tpu_custom_call.1
$region0: #{tpu_custom_call.1}
  #allocation0 [shape = 'u32[]', space=smem, size = 0x4, offset = 0x4, fixed_abs, tag = 'smem constant byte address 0x4 - core index']
  #allocation1 [shape = 'u32[144,128]{1,0:T(1,128)}', space=vmem, size = 0x12000, scoped, tag = 'internal scratch']
  %s0 = inlined_call_operand.hbm [shape: f32[2,8,32], index: 0, kind: input, shape index: {}]
  %s1 = inlined_call_operand.hbm [shape: f32[32,64], index: 1, kind: input, shape index: {}]
  %s2 = inlined_call_operand.vmem [shape: f32[1,64], index: 2, kind: input, shape index: {}]
  %s3 = inlined_call_operand.vmem [shape: f32[1,64], index: 3, kind: input, shape index: {}]
  %s4 = inlined_call_operand.hbm [shape: f32[32,128], index: 4, kind: input, shape index: {}]
  %s5 = inlined_call_operand.vmem [shape: f32[1,128], index: 5, kind: input, shape index: {}]
  %s6 = inlined_call_operand.hbm [shape: f32[2,128], index: 6, kind: output, shape index: {}]
  %s7 = sld [smem:[#allocation0]]
  $region46: #{tpu_custom_call.1} parent=0
    _
  %s9 = ssub.s32 1, %s7
  %s10 = scalar_select 0, %s9, %s7
  $region1: #{tpu_custom_call.1} parent=0
    #allocation2 [shape = 'u8[8192]{0}', space=vmem, size = 0x2000, scoped, tag = 'input window, operand 0, single buffered']
    #allocation3 [shape = 's32[1]{0}', space=sflag, size = 0x4, scoped, tag = 'scoped memory for tpu_custom_call.1']
    #allocation4 [shape = 's32[1]{0}', space=sflag, size = 0x4, scoped, tag = 'scoped memory for tpu_custom_call.1']
    #allocation5 [shape = 'u8[16384]{0}', space=vmem, size = 0x4000, scoped, tag = 'input window, operand 1, single buffered']
    #allocation6 [shape = 's32[1]{0}', space=sflag, size = 0x4, scoped, tag = 'scoped memory for tpu_custom_call.1']
    #allocation7 [shape = 'u8[16384]{0}', space=vmem, size = 0x4000, scoped, tag = 'input window, operand 4, single buffered']
    #allocation8 [shape = 'u8[1024]{0}', space=vmem, size = 0x400, scoped, tag = 'output window, operand 0, single buffered']
    %11 = vsyncpa [#allocation3], 0
    %12 = vsyncpa [#allocation6], 0
    %13 = vsyncpa [#allocation4], 0
    // Predicated region
    $region2: #{tpu_custom_call.1} parent=1 // pred_check
      _
    $region3: #{tpu_custom_call.1} parent=1 // pred_check_branch
      %15 = sbr.rel (0) target = $region5
    $region4: #{tpu_custom_call.1} parent=1 // pred_region
      %s17 = ssub.s32 256, 256
      %18 = vsyncadd [#allocation3], %s17
      %s19 = sshll.u32 [#allocation2], 4
      %s20 = int_to_ptr.vmem [resolvable:$true] %s19
      %25 = dma.hbm_to_vmem [thread:$0]  %s0, 256, %s20, [#allocation3], 128, 128, 8
    $region5: #{tpu_custom_call.1} parent=1 // pred_fallthru
      _
    // Predicated region
    $region6: #{tpu_custom_call.1} parent=1 // pred_check
      _
    $region7: #{tpu_custom_call.1} parent=1 // pred_check_branch
      %27 = sbr.rel (0) target = $region9
    $region8: #{tpu_custom_call.1} parent=1 // pred_region
      %s29 = ssub.s32 512, 512
      %30 = vsyncadd [#allocation6], %s29
      %s31 = sshll.u32 [#allocation5], 4
      %s32 = int_to_ptr.vmem [resolvable:$true] %s31
      %37 = dma.hbm_to_vmem [thread:$0]  %s1, 512, %s32, [#allocation6], 128, 128, 8
    $region9: #{tpu_custom_call.1} parent=1 // pred_fallthru
      _
    // Predicated region
    $region10: #{tpu_custom_call.1} parent=1 // pred_check
      _
    $region11: #{tpu_custom_call.1} parent=1 // pred_check_branch
      %39 = sbr.rel (0) target = $region13
    $region12: #{tpu_custom_call.1} parent=1 // pred_region
      _
    $region13: #{tpu_custom_call.1} parent=1 // pred_fallthru
      _
    // Predicated region
    $region14: #{tpu_custom_call.1} parent=1 // pred_check
      _
    $region15: #{tpu_custom_call.1} parent=1 // pred_check_branch
      %41 = sbr.rel (0) target = $region17
    $region16: #{tpu_custom_call.1} parent=1 // pred_region
      _
    $region17: #{tpu_custom_call.1} parent=1 // pred_fallthru
      _
    // Predicated region
    $region18: #{tpu_custom_call.1} parent=1 // pred_check
      _
    $region19: #{tpu_custom_call.1} parent=1 // pred_check_branch
      %43 = sbr.rel (0) target = $region21
    $region20: #{tpu_custom_call.1} parent=1 // pred_region
      %s45 = ssub.s32 512, 512
      %46 = vsyncadd [#allocation6], %s45
      %s47 = sshll.u32 [#allocation7], 4
      %s48 = int_to_ptr.vmem [resolvable:$true] %s47
      %53 = dma.hbm_to_vmem [thread:$0]  %s4, 512, %s48, [#allocation6], 128, 128, 8
    $region21: #{tpu_custom_call.1} parent=1 // pred_fallthru
      _
    // Predicated region
    $region22: #{tpu_custom_call.1} parent=1 // pred_check
      _
    $region23: #{tpu_custom_call.1} parent=1 // pred_check_branch
      %55 = sbr.rel (0) target = $region25
    $region24: #{tpu_custom_call.1} parent=1 // pred_region
      _
    $region25: #{tpu_custom_call.1} parent=1 // pred_fallthru
      _
    // Predicated region
    $region26: #{tpu_custom_call.1} parent=1 // pred_check
      _
    $region27: #{tpu_custom_call.1} parent=1 // pred_check_branch
      %57 = sbr.rel (0) target = $region29
    $region28: #{tpu_custom_call.1} parent=1 // pred_region
      %58 = dma.done [#allocation3], 256
    $region29: #{tpu_custom_call.1} parent=1 // pred_fallthru
      _
    // Predicated region
    $region30: #{tpu_custom_call.1} parent=1 // pred_check
      _
    $region31: #{tpu_custom_call.1} parent=1 // pred_check_branch
      %60 = sbr.rel (0) target = $region33
    $region32: #{tpu_custom_call.1} parent=1 // pred_region
      %61 = dma.done [#allocation6], 512
    $region33: #{tpu_custom_call.1} parent=1 // pred_fallthru
      _
    // Predicated region
    $region34: #{tpu_custom_call.1} parent=1 // pred_check
      _
    $region35: #{tpu_custom_call.1} parent=1 // pred_check_branch
      %63 = sbr.rel (0) target = $region37
    $region36: #{tpu_custom_call.1} parent=1 // pred_region
      %64 = dma.done [#allocation6], 512
    $region37: #{tpu_custom_call.1} parent=1 // pred_fallthru
      _
    %v65 = vld [vmem:[#allocation2] sm:$0xff]
    %v66 = vld [vmem:[#allocation2 + $0x8] sm:$0xff]
    %v67 = vld [vmem:[#allocation5] sm:$0xff]
    %v68 = vld [vmem:[#allocation5 + $0x8] sm:$0xff]
    %v69 = vld [vmem:[#allocation5 + $0x10] sm:$0xff]
    %v70 = vld [vmem:[#allocation5 + $0x18] sm:$0xff]
    %v71 = vld [vmem:[%s2] sm:$0x1]
    %v73 = vlaneseq
    %v74 = vshrl.u32 %v73, 7
    %v75 = vsub.s32 0, %v74
    %v76 = vrot.slane %v71, %v75
    %vm78 = vcmask 261120
    %v80 = vsel %vm78, %v65, 0
    %v83 = vsel %vm78, %v66, 0
    %85 = vmatprep.subr.mxu0 0.0
    %86 = vmatpush1.msra.mxu0 %v67
    %87 = vmatprep.subr.mxu0 0.0
    %88 = vmatpush1.msra.mxu0 %v68
    %89 = vmatprep.subr.mxu0 0.0
    %90 = vmatpush1.msra.mxu0 %v69
    %91 = vmatprep.subr.mxu0 0.0
    %92 = vmatpush1.msra.mxu0 %v70
    %93 = vmatprep.subr.mxu0 0.0
    %94 = vmatpush1.msra.mxu0 0.0
    %95 = vmatprep.subr.mxu0 0.0
    %96 = vmatpush1.msra.mxu0 0.0
    %97 = vmatprep.subr.mxu0 0.0
    %98 = vmatpush1.msra.mxu0 0.0
    %99 = vmatprep.subr.mxu0 0.0
    %100 = vmatpush1.msra.mxu0 0.0
    %101 = vmatprep.subr.mxu0 0.0
    %102 = vmatpush1.msra.mxu0 0.0
    %103 = vmatprep.subr.mxu0 0.0
    %104 = vmatpush1.msra.mxu0 0.0
    %105 = vmatprep.subr.mxu0 0.0
    %106 = vmatpush1.msra.mxu0 0.0
    %107 = vmatprep.subr.mxu0 0.0
    %108 = vmatpush1.msra.mxu0 0.0
    %109 = vmatprep.subr.mxu0 0.0
    %110 = vmatpush1.msra.mxu0 0.0
    %111 = vmatprep.subr.mxu0 0.0
    %112 = vmatpush1.msra.mxu0 0.0
    %113 = vmatprep.subr.mxu0 0.0
    %114 = vmatpush1.msra.mxu0 0.0
    %115 = vmatprep.subr.mxu0 0.0
    %116 = vmatpush1.msra.mxu0 0.0
    %117 = vmatprep.subr.mxu0 0.0
    %118 = vmatpush1.msra.mxu0 0.0
    %119 = vmatprep.subr.mxu0 0.0
    %120 = vmatpush1.msra.mxu0 0.0
    %121 = vmatprep.subr.mxu0 0.0
    %122 = vmatpush1.msra.mxu0 0.0
    %123 = vmatprep.subr.mxu0 0.0
    %124 = vmatpush1.msra.mxu0 0.0
    %125 = vmatprep.subr.mxu0 0.0
    %126 = vmatpush1.msra.mxu0 0.0
    %127 = vmatprep.subr.mxu0 0.0
    %128 = vmatpush1.msra.mxu0 0.0
    %129 = vmatprep.subr.mxu0 0.0
    %130 = vmatpush1.msra.mxu0 0.0
    %131 = vmatprep.subr.mxu0 0.0
    %132 = vmatpush1.msra.mxu0 0.0
    %133 = vmatprep.subr.mxu0 0.0
    %134 = vmatpush1.msra.mxu0 0.0
    %135 = vmatprep.subr.mxu0 0.0
    %136 = vmatpush1.msra.mxu0 0.0
    %137 = vmatprep.subr.mxu0 0.0
    %138 = vmatpush1.msra.mxu0 0.0
    %139 = vmatprep.subr.mxu0 0.0
    %140 = vmatpush1.msra.mxu0 0.0
    %141 = vmatprep.subr.mxu0 0.0
    %142 = vmatpush1.msra.mxu0 0.0
    %143 = vmatprep.subr.mxu0 0.0
    %144 = vmatpush1.msra.mxu0 0.0
    %145 = vmatprep.subr.mxu0 0.0
    %146 = vmatpush1.msra.mxu0 0.0
    %147 = vmatprep.subr.mxu0 0.0
    %148 = vmatpush1.msra.mxu0 0.0
    %149 = vmatprep.mubr.f32.mxu0 0.0
    %150 = vmatmul.mubr.f32.gmra.mrb[0].mxu0 %v80
    %v151 = vpop.f32.mrb[0].mxu0
    %v152 = vadd.f32 %v76, %v151
    %v153 = vpop.f32.mrb[0].mxu0
    %154 = vmatprep.mubr.f32.mxu0 0.0
    %155 = vmatmul.mubr.f32.gmra.mrb[0].mxu0 %v83
    %v156 = vpop.f32.mrb[0].mxu0
    %v157 = vadd.f32 %v76, %v156
    %v158 = vpop.f32.mrb[0].mxu0
    %159 = vdwg.mxu0
    %v160 = vmul.f32 %v152, 0.5
    %v161 = vmul.f32 %v157, 0.5
    %v162 = vmul.f32 %v152, 0.70710677
    %v163 = vmul.f32 %v157, 0.70710677
    %v164 = verf.f32.pop %v162
    %v165 = verf.f32.pop %v163
    %v166 = vadd.f32 %v164, 1.0
    %v167 = vadd.f32 %v165, 1.0
    %v168 = vmul.f32 %v160, %v166
    %v169 = vmul.f32 %v161, %v167
    %v170 = vld [vmem:[%s3] sm:$0x1]
    %v172 = vlaneseq
    %v173 = vshrl.u32 %v172, 7
    %v174 = vsub.s32 0, %v173
    %v175 = vrot.slane %v170, %v174
    %v177 = vmul.f32 %v168, %v175
    %v178 = vmul.f32 %v169, %v175
    %vm179 = vcmask 523264
    %v180 = vsel %vm179, %v177, 0.0
    %181 = vadd.xlane.f32.xlu0 %v180
    %v182 = vpop.xlane.xlu0 %181
    %v183 = vsel %vm179, %v178, 0.0
    %184 = vadd.xlane.f32.xlu0 %v183
    %v185 = vpop.xlane.xlu0 %184
    %v188 = vlaneseq
    %v189 = vand.u32 %v188, 127
    %v190 = vlaneseq
    %v191 = vshrl.u32 %v190, 7
    %v192 = vsub.s32 %v189, %v191
    %v193 = vrot.slane %v182, %v192
    %v194 = vlaneseq
    %v195 = vshrl.u32 %v194, 7
    %v196 = vsub.s32 %v189, %v195
    %v197 = vrot.slane %v185, %v196
    %vm198 = vcmask 1041409
    %v199 = vsel %vm198, %v197, %v193
    %vm201 = vcmask 58368
    %v202 = vsel %vm201, %v199, -inf
    %203 = vmax.xlane.f32.xlu0 %v202
    %v204 = vpop.xlane.xlu0 %203
    %v206 = vlaneseq
    %v207 = vshrl.u32 %v206, 7
    %v208 = vsub.s32 0, %v207
    %v209 = vrot.slane %v204, %v208
    %v210 = vlaneseq
    %v211 = vshrl.u32 %v210, 7
    %v212 = vsub.s32 1, %v211
    %v213 = vrot.slane %v204, %v212
    %v216 = vsub.f32 %v182, %v209
    %v217 = vsub.f32 %v185, %v213
    %v218 = vmul.f32 %v216, 1.442695
    %v219 = vpow.pop %v218
    %v220 = vmul.f32 %v217, 1.442695
    %v221 = vpow.pop %v220
    %224 = vset.pattern.permute.xlu0 0
    %225 = vperm.xlu0 %224, %v219
    %v226 = vpop.permute.xlu0 %225
    %227 = vset.pattern.permute.xlu0 0
    %228 = vperm.xlu0 %227, %v221
    %v229 = vpop.permute.xlu0 %228
    %v230 = vlaneseq
    %v231 = vshrl.u32 %v230, 7
    %v232 = vsub.s32 %v189, %v231
    %v233 = vrot.slane %v226, %v232
    %v234 = vlaneseq
    %v235 = vshrl.u32 %v234, 7
    %v236 = vsub.s32 %v189, %v235
    %v237 = vrot.slane %v229, %v236
    %v238 = vsel %vm198, %v237, %v233
    %v240 = vsel %vm201, %v238, 0.0
    %241 = vadd.xlane.f32.xlu0 %v240
    %v242 = vpop.xlane.xlu0 %241
    %v244 = vlaneseq
    %v245 = vshrl.u32 %v244, 7
    %v246 = vsub.s32 0, %v245
    %v247 = vrot.slane %v242, %v246
    %v248 = vlaneseq
    %v249 = vshrl.u32 %v248, 7
    %v250 = vsub.s32 1, %v249
    %v251 = vrot.slane %v242, %v250
    %v254 = vrcp.pop %v247
    %v255 = vmul.f32 %v219, %v254
    %v256 = vrcp.pop %v251
    %v257 = vmul.f32 %v221, %v256
    %259 = vset.pattern.permute.xlu0 0
    %260 = vperm.xlu0 %259, %v255
    %v261 = vpop.permute.xlu0 %260
    %264 = vset.pattern.permute.xlu0 0
    %265 = vperm.xlu0 %264, %v257
    %v266 = vpop.permute.xlu0 %265
    %v268 = vmul.f32 %v261, %v65
    %v269 = vmul.f32 %v266, %v66
    %v270 = vsel %vm78, %v268, 0.0
    %v271 = vrot.slane %v270, 4
    %v272 = vadd.f32 %v270, %v271
    %v273 = vrot.slane %v272, 2
    %v274 = vadd.f32 %v272, %v273
    %v275 = vrot.slane %v274, 1
    %v276 = vadd.f32 %v274, %v275
    %v277 = vsel %vm78, %v269, 0.0
    %v278 = vrot.slane %v277, 4
    %v279 = vadd.f32 %v277, %v278
    %v280 = vrot.slane %v279, 2
    %v281 = vadd.f32 %v279, %v280
    %v282 = vrot.slane %v281, 1
    %v283 = vadd.f32 %v281, %v282
    %v284 = vld [vmem:[#allocation7] sm:$0xff]
    %v285 = vld [vmem:[#allocation7 + $0x8] sm:$0xff]
    %v286 = vld [vmem:[#allocation7 + $0x10] sm:$0xff]
    %v287 = vld [vmem:[#allocation7 + $0x18] sm:$0xff]
    %v288 = vld [vmem:[%s5] sm:$0x1]
    %v290 = vlaneseq
    %v291 = vshrl.u32 %v290, 7
    %v292 = vsub.s32 0, %v291
    %v293 = vrot.slane %v288, %v292
    %v297 = vsel %vm198, %v283, %v276
    %v298 = vsel %vm78, %v297, 0
    %300 = vmatprep.subr.mxu0 0.0
    %301 = vmatpush1.msra.mxu0 %v284
    %302 = vmatprep.subr.mxu0 0.0
    %303 = vmatpush1.msra.mxu0 %v285
    %304 = vmatprep.subr.mxu0 0.0
    %305 = vmatpush1.msra.mxu0 %v286
    %306 = vmatprep.subr.mxu0 0.0
    %307 = vmatpush1.msra.mxu0 %v287
    %308 = vmatprep.subr.mxu0 0.0
    %309 = vmatpush1.msra.mxu0 0.0
    %310 = vmatprep.subr.mxu0 0.0
    %311 = vmatpush1.msra.mxu0 0.0
    %312 = vmatprep.subr.mxu0 0.0
    %313 = vmatpush1.msra.mxu0 0.0
    %314 = vmatprep.subr.mxu0 0.0
    %315 = vmatpush1.msra.mxu0 0.0
    %316 = vmatprep.subr.mxu0 0.0
    %317 = vmatpush1.msra.mxu0 0.0
    %318 = vmatprep.subr.mxu0 0.0
    %319 = vmatpush1.msra.mxu0 0.0
    %320 = vmatprep.subr.mxu0 0.0
    %321 = vmatpush1.msra.mxu0 0.0
    %322 = vmatprep.subr.mxu0 0.0
    %323 = vmatpush1.msra.mxu0 0.0
    %324 = vmatprep.subr.mxu0 0.0
    %325 = vmatpush1.msra.mxu0 0.0
    %326 = vmatprep.subr.mxu0 0.0
    %327 = vmatpush1.msra.mxu0 0.0
    %328 = vmatprep.subr.mxu0 0.0
    %329 = vmatpush1.msra.mxu0 0.0
    %330 = vmatprep.subr.mxu0 0.0
    %331 = vmatpush1.msra.mxu0 0.0
    %332 = vmatprep.subr.mxu0 0.0
    %333 = vmatpush1.msra.mxu0 0.0
    %334 = vmatprep.subr.mxu0 0.0
    %335 = vmatpush1.msra.mxu0 0.0
    %336 = vmatprep.subr.mxu0 0.0
    %337 = vmatpush1.msra.mxu0 0.0
    %338 = vmatprep.subr.mxu0 0.0
    %339 = vmatpush1.msra.mxu0 0.0
    %340 = vmatprep.subr.mxu0 0.0
    %341 = vmatpush1.msra.mxu0 0.0
    %342 = vmatprep.subr.mxu0 0.0
    %343 = vmatpush1.msra.mxu0 0.0
    %344 = vmatprep.subr.mxu0 0.0
    %345 = vmatpush1.msra.mxu0 0.0
    %346 = vmatprep.subr.mxu0 0.0
    %347 = vmatpush1.msra.mxu0 0.0
    %348 = vmatprep.subr.mxu0 0.0
    %349 = vmatpush1.msra.mxu0 0.0
    %350 = vmatprep.subr.mxu0 0.0
    %351 = vmatpush1.msra.mxu0 0.0
    %352 = vmatprep.subr.mxu0 0.0
    %353 = vmatpush1.msra.mxu0 0.0
    %354 = vmatprep.subr.mxu0 0.0
    %355 = vmatpush1.msra.mxu0 0.0
    %356 = vmatprep.subr.mxu0 0.0
    %357 = vmatpush1.msra.mxu0 0.0
    %358 = vmatprep.subr.mxu0 0.0
    %359 = vmatpush1.msra.mxu0 0.0
    %360 = vmatprep.subr.mxu0 0.0
    %361 = vmatpush1.msra.mxu0 0.0
    %362 = vmatprep.subr.mxu0 0.0
    %363 = vmatpush1.msra.mxu0 0.0
    %364 = vmatprep.mubr.f32.mxu0 0.0
    %365 = vmatmul.mubr.f32.gmra.mrb[0].mxu0 %v298
    %v366 = vpop.f32.mrb[0].mxu0
    %v367 = vadd.f32 %v293, %v366
    %v368 = vpop.f32.mrb[0].mxu0
    %369 = vdwg.mxu0
    %370 = vst [vmem:[#allocation8] sm:$0x3] %v367
    // Predicated region
    $region38: #{tpu_custom_call.1} parent=1 // pred_check
      _
    $region39: #{tpu_custom_call.1} parent=1 // pred_check_branch
      %372 = sbr.rel (0) target = $region41
    $region40: #{tpu_custom_call.1} parent=1 // pred_region
      %s374 = ssub.s32 32, 32
      %375 = vsyncadd [#allocation4], %s374
      %s377 = sshll.u32 [#allocation8], 4
      %s378 = int_to_ptr.vmem [resolvable:$true] %s377
      %380 = dma.vmem_to_hbm [thread:$0]  %s378, 32, %s6, [#allocation4]
    $region41: #{tpu_custom_call.1} parent=1 // pred_fallthru
      _
    // Predicated region
    $region42: #{tpu_custom_call.1} parent=1 // pred_check
      _
    $region43: #{tpu_custom_call.1} parent=1 // pred_check_branch
      %382 = sbr.rel (0) target = $region45
    $region44: #{tpu_custom_call.1} parent=1 // pred_region
      %383 = dma.done [#allocation4], 32
    $region45: #{tpu_custom_call.1} parent=1 // pred_fallthru
      _
    %384 = vsyncpa [#allocation3], 1
    %385 = vsyncpa [#allocation6], 1
    %386 = vsyncpa [#allocation4], 1

</llo_original>
